<compile_context>
chip_gen: v7x
topology: tpu7x:2x2x1
jax: 0.10.0
libtpu: 0.0.40
codegen_flags: <defaults>
</compile_context>

<pallas_src>
import jax
import jax.numpy as jnp
from jax.experimental import pallas as pl
from jax.experimental.pallas import tpu as pltpu


def _adversary_kernel(x_ref, attack_ref, inv_proj_ref, mask_ref, o_ref):
    # unprojected_attack = einsum('n d, m n -> m d', inv_proj, attack)
    # bf16 x bf16 -> f32 accumulation on the MXU.
    unproj = jnp.dot(
        attack_ref[...], inv_proj_ref[...], preferred_element_type=jnp.float32
    )
    # x[mask] = (x + unproj)[mask]  <=>  x + mask * unproj   (mask in {0,1}).
    # (tm,1) -> (tm,tn) broadcast multiply + add in f32 on the VPU.
    o_ref[...] = (x_ref[...] + mask_ref[...] * unproj).astype(o_ref.dtype)


def _round_up(a: int, b: int) -> int:
    return ((a + b - 1) // b) * b


def _pad_axis(arr, axis, target):
    pad = target - arr.shape[axis]
    if pad == 0:
        return arr
    widths = [(0, 0)] * arr.ndim
    widths[axis] = (0, pad)
    return jnp.pad(arr, widths)


def whitened_gd_adversary_forward(x, attack, inv_proj, attack_mask, *, tm=512, tn=512):
    """Pallas implementation of WhitenedGDAdversary.forward.

    x:           (B, S, D)      float
    attack:      (B, S_a, N)    float   (S_a >= S; sliced to S like torch)
    inv_proj:    (N, D)         float
    attack_mask: (B, S_a)       bool    (sliced to S like torch)
    """
    B, S, D = x.shape
    N = attack.shape[-1]
    assert inv_proj.shape == (N, D)

    M = B * S
    x2 = x.reshape(M, D).astype(jnp.float32)
    a2 = attack[:, :S, :].reshape(M, N).astype(jnp.bfloat16)    # bf16 MXU operand
    w2 = inv_proj.astype(jnp.bfloat16)                          # bf16 MXU operand
    # Mask kept as a tiny (M,1) f32 {0,1} stream (4 B/row, negligible vs the
    # lane-dense x/attack/out streams); applied as a multiply in-kernel.
    m2 = attack_mask[:, :S].reshape(M, 1).astype(jnp.float32)

    # ---- tile selection: multiples of (16, 128) (bf16 sublane packing / 256
    # for the v6e/v7x MXU), with full-extent fallbacks for small dims. ----
    tm_eff = min(tm, _round_up(M, 16))
    if D > tn:
        tn_eff = tn                     # 512: multiple of 256, lane-dense output
        Dp = _round_up(D, tn_eff)
    else:
        tn_eff = D                      # block == full last dim: (8,128) rule waived
        Dp = D
    Mp = _round_up(M, tm_eff)

    # ---- pad ragged edges once in the wrapper (cheaper than per-tile masks);
    # padded mask rows are 0 so padded output rows are just (padded) x. ----
    x2 = _pad_axis(_pad_axis(x2, 0, Mp), 1, Dp)
    a2 = _pad_axis(a2, 0, Mp)
    m2 = _pad_axis(m2, 0, Mp)
    w2 = _pad_axis(w2, 1, Dp)

    grid = (pl.cdiv(Mp, tm_eff), pl.cdiv(Dp, tn_eff))

    out = pl.pallas_call(
        _adversary_kernel,
        out_shape=jax.ShapeDtypeStruct((Mp, Dp), jnp.float32),
        grid_spec=pltpu.PrefetchScalarGridSpec(
            num_scalar_prefetch=0,
            grid=grid,
            in_specs=[
                pl.BlockSpec((tm_eff, tn_eff), lambda i, j: (i, j)),  # x (f32)
                pl.BlockSpec((tm_eff, N), lambda i, j: (i, 0)),       # attack (bf16)
                pl.BlockSpec((N, tn_eff), lambda i, j: (0, j)),       # inv_proj (bf16)
                pl.BlockSpec((tm_eff, 1), lambda i, j: (i, 0)),       # mask {0,1} f32
            ],
            out_specs=pl.BlockSpec((tm_eff, tn_eff), lambda i, j: (i, j)),
        ),
        compiler_params=pltpu.CompilerParams(
            # Both grid axes are independent -> megacore-shardable on v7x.
            dimension_semantics=("parallel", "parallel"),
            # Raise the scoped VMEM limit (default 32 MiB) so large-tm/resident
            # inv_proj slices pipeline; 64 MiB stays within v7x physical VMEM.
            vmem_limit_bytes=64 * 1024 * 1024,
        ),
    )(x2, a2, w2, m2)

    return out[:M, :D].reshape(B, S, D).astype(x.dtype)


def clip_attack(attack, epsilon):
    """__init__-time clipping of the attack parameter (plain JAX glue)."""
    norms = jnp.linalg.norm(attack, axis=-1, keepdims=True)
    scale = jnp.maximum(norms / epsilon, 1.0)
    return attack / scale


if __name__ == "__main__":
    key = jax.random.PRNGKey(0)
    k_x, k_attack, k_proj, k_mask = jax.random.split(key, 4)

    B, S, D = 2, 8, 32   # batch, seq, hidden dim (n == d, whitened space)
    epsilon = 1.0

    # Deterministic synthetic parameters (module __init__ semantics).
    x = jax.random.normal(k_x, (B, S, D), dtype=jnp.float32)
    attack_raw = jax.random.normal(k_attack, (B, S, D), dtype=jnp.float32)
    attack = clip_attack(attack_raw, epsilon)

    # proj: random well-conditioned square matrix; inv_proj = inverse(proj).
    proj = jax.random.normal(k_proj, (D, D), dtype=jnp.float32) * 0.1 + jnp.eye(
        D, dtype=jnp.float32
    )
    inv_proj = jnp.linalg.inv(proj)

    attack_mask = jax.random.bernoulli(k_mask, p=0.5, shape=(B, S))

    # TODO(synk): torch mutates x in place (x[mask] = ...); the JAX version
    # returns a new array with identical values.
    out = whitened_gd_adversary_forward(x, attack, inv_proj, attack_mask)
    out = jax.block_until_ready(out)

    # Reference 1: same bf16 operand rounding as the kernel, f32 accumulation.
    a_bf = attack.astype(jnp.bfloat16).astype(jnp.float32)
    w_bf = inv_proj.astype(jnp.bfloat16).astype(jnp.float32)
    unproj_bf = jnp.einsum("nd,bsn->bsd", w_bf, a_bf)
    ref_bf = jnp.where(attack_mask[:, :S, None], x + unproj_bf, x)
    assert jnp.allclose(out, ref_bf, atol=1e-4, rtol=1e-4), "mismatch vs bf16 reference"

    # Reference 2: pure f32 reference; tolerance bounds the bf16 input rounding.
    unproj_f32 = jnp.einsum("nd,bsn->bsd", inv_proj, attack)
    ref_f32 = jnp.where(attack_mask[:, :S, None], x + unproj_f32, x)
    assert jnp.allclose(out, ref_f32, atol=2e-2, rtol=2e-2), "mismatch vs f32 reference"

    # Masked-out rows must be exactly x.
    assert jnp.array_equal(
        jnp.where(attack_mask[:, :S, None], x, out), x
    ), "unmasked rows were modified"

    print("KERNEL_OK")
</pallas_src>

<mosaic_0001>
module attributes {stable_mosaic.version = 11 : i64} {
  func.func @_adversary_kernel(%arg0: i32, %arg1: i32, %arg2: memref<16x32xf32, #tpu.memory_space<vmem>>, %arg3: memref<16x32xbf16, #tpu.memory_space<vmem>>, %arg4: memref<32x32xbf16, #tpu.memory_space<vmem>>, %arg5: memref<16x1xf32, #tpu.memory_space<vmem>>, %arg6: memref<16x32xf32, #tpu.memory_space<vmem>>) attributes {dimension_semantics = [#tpu.dimension_semantics<parallel>, #tpu.dimension_semantics<parallel>], iteration_bounds = array<i64: 1, 1>, scalar_prefetch = 0 : i64, scratch_operands = 0 : i64, tpu.core_type = #tpu.core_type<tc>, window_params = [{transform_indices = @transform_0, window_bounds = array<i64: 16, 32>}, {transform_indices = @transform_1, window_bounds = array<i64: 16, 32>}, {transform_indices = @transform_2, window_bounds = array<i64: 32, 32>}, {transform_indices = @transform_3, window_bounds = array<i64: 16, 1>}, {transform_indices = @transform_4, window_bounds = array<i64: 16, 32>}]} {
    %c0 = arith.constant 0 : index
    %c0_0 = arith.constant 0 : index
    %0 = vector.load %arg3[%c0, %c0_0] : memref<16x32xbf16, #tpu.memory_space<vmem>>, vector<16x32xbf16>
    %c0_1 = arith.constant 0 : index
    %c0_2 = arith.constant 0 : index
    %1 = vector.load %arg4[%c0_1, %c0_2] : memref<32x32xbf16, #tpu.memory_space<vmem>>, vector<32x32xbf16>
    %cst = arith.constant dense<0.000000e+00> : vector<16x32xf32>
    %2 = tpu.matmul %0, %1, %cst {dimension_numbers = #tpu.dot_dimension_numbers<[1], [0], [0], [1], [0, 0, 1, 1], [], []>} : vector<16x32xbf16>, vector<32x32xbf16>, vector<16x32xf32> -> vector<16x32xf32>
    %c0_3 = arith.constant 0 : index
    %c0_4 = arith.constant 0 : index
    %3 = vector.load %arg2[%c0_3, %c0_4] : memref<16x32xf32, #tpu.memory_space<vmem>>, vector<16x32xf32>
    %c0_5 = arith.constant 0 : index
    %c0_6 = arith.constant 0 : index
    %4 = vector.load %arg5[%c0_5, %c0_6] : memref<16x1xf32, #tpu.memory_space<vmem>>, vector<16x1xf32>
    %5 = vector.broadcast %4 : vector<16x1xf32> to vector<16x32xf32>
    %6 = arith.mulf %5, %2 : vector<16x32xf32>
    %7 = arith.addf %3, %6 : vector<16x32xf32>
    %c0_7 = arith.constant 0 : index
    %c0_8 = arith.constant 0 : index
    %8 = vector.load %arg6[%c0_7, %c0_8] : memref<16x32xf32, #tpu.memory_space<vmem>>, vector<16x32xf32>
    tpu.vector_store %arg6[%c0_7, %c0_8], %7 {strides = array<i32>} : memref<16x32xf32, #tpu.memory_space<vmem>>, vector<16x32xf32>,
    return
  }
  func.func @transform_0(%arg0: i32, %arg1: i32) -> (i32, i32) {
    %c0_i32 = arith.constant 0 : i32
    return %arg0, %arg1 : i32, i32
  }
  func.func @transform_1(%arg0: i32, %arg1: i32) -> (i32, i32) {
    %c0_i32 = arith.constant 0 : i32
    %c0_i32_0 = arith.constant 0 : i32
    return %arg0, %c0_i32 : i32, i32
  }
  func.func @transform_2(%arg0: i32, %arg1: i32) -> (i32, i32) {
    %c0_i32 = arith.constant 0 : i32
    %c0_i32_0 = arith.constant 0 : i32
    return %c0_i32, %arg1 : i32, i32
  }
  func.func @transform_3(%arg0: i32, %arg1: i32) -> (i32, i32) {
    %c0_i32 = arith.constant 0 : i32
    %c0_i32_0 = arith.constant 0 : i32
    return %arg0, %c0_i32 : i32, i32
  }
  func.func @transform_4(%arg0: i32, %arg1: i32) -> (i32, i32) {
    %c0_i32 = arith.constant 0 : i32
    return %arg0, %arg1 : i32, i32
  }
}

</mosaic_0001>

<llo_original>
// kernel: tpu_custom_call.1
$region0: #{tpu_custom_call.1}
  #allocation0 [shape = 'u32[]', space=smem, size = 0x4, offset = 0x4, fixed_abs, tag = 'smem constant byte address 0x4 - core index']
  #allocation1 [shape = 'u32[144,128]{1,0:T(1,128)}', space=vmem, size = 0x12000, scoped, tag = 'internal scratch']
  %s0 = inlined_call_operand.hbm [shape: f32[16,32], index: 0, kind: input, shape index: {}]
  %s1 = inlined_call_operand.hbm [shape: bf16[16,32], index: 1, kind: input, shape index: {}]
  %s2 = inlined_call_operand.hbm [shape: bf16[32,32], index: 2, kind: input, shape index: {}]
  %s3 = inlined_call_operand.hbm [shape: f32[16,1], index: 3, kind: input, shape index: {}]
  %s4 = inlined_call_operand.hbm [shape: f32[16,32], index: 4, kind: output, shape index: {}]
  %s5 = sld [smem:[#allocation0]]
  $region42: #{tpu_custom_call.1} parent=0
    _
  %s7 = ssub.s32 1, %s5
  %s8 = scalar_select 0, %s7, %s5
  $region1: #{tpu_custom_call.1} parent=0
    #allocation2 [shape = 'u8[8192]{0}', space=vmem, size = 0x2000, scoped, tag = 'input window, operand 0, single buffered']
    #allocation3 [shape = 's32[1]{0}', space=sflag, size = 0x4, scoped, tag = 'scoped memory for tpu_custom_call.1']
    #allocation4 [shape = 's32[1]{0}', space=sflag, size = 0x4, scoped, tag = 'scoped memory for tpu_custom_call.1']
    #allocation5 [shape = 'u8[4096]{0}', space=vmem, size = 0x1000, scoped, tag = 'input window, operand 1, single buffered']
    #allocation6 [shape = 's32[1]{0}', space=sflag, size = 0x4, scoped, tag = 'scoped memory for tpu_custom_call.1']
    #allocation7 [shape = 'u8[8192]{0}', space=vmem, size = 0x2000, scoped, tag = 'input window, operand 2, single buffered']
    #allocation8 [shape = 'u8[8192]{0}', space=vmem, size = 0x2000, scoped, tag = 'input window, operand 3, single buffered']
    #allocation9 [shape = 's32[1]{0}', space=sflag, size = 0x4, scoped, tag = 'scoped memory for tpu_custom_call.1']
    #allocation10 [shape = 'u8[8192]{0}', space=vmem, size = 0x2000, scoped, tag = 'output window, operand 0, single buffered']
    %9 = vsyncpa [#allocation3], 0
    %10 = vsyncpa [#allocation6], 0
    %11 = vsyncpa [#allocation9], 0
    %12 = vsyncpa [#allocation4], 0
    // Predicated region
    $region2: #{tpu_custom_call.1} parent=1 // pred_check
      _
    $region3: #{tpu_custom_call.1} parent=1 // pred_check_branch
      %14 = sbr.rel (0) target = $region5
    $region4: #{tpu_custom_call.1} parent=1 // pred_region
      %s16 = ssub.s32 256, 256
      %17 = vsyncadd [#allocation3], %s16
      %s18 = sshll.u32 [#allocation2], 4
      %s19 = int_to_ptr.vmem [resolvable:$true] %s18
      %24 = dma.hbm_to_vmem [thread:$0]  %s0, 256, %s19, [#allocation3], 128, 128, 8
    $region5: #{tpu_custom_call.1} parent=1 // pred_fallthru
      _
    // Predicated region
    $region6: #{tpu_custom_call.1} parent=1 // pred_check
      _
    $region7: #{tpu_custom_call.1} parent=1 // pred_check_branch
      %26 = sbr.rel (0) target = $region9
    $region8: #{tpu_custom_call.1} parent=1 // pred_region
      %s28 = ssub.s32 128, 128
      %29 = vsyncadd [#allocation6], %s28
      %s30 = sshll.u32 [#allocation5], 4
      %s31 = int_to_ptr.vmem [resolvable:$true] %s30
      %36 = dma.hbm_to_vmem [thread:$0]  %s1, 128, %s31, [#allocation6], 64, 64, 4
    $region9: #{tpu_custom_call.1} parent=1 // pred_fallthru
      _
    // Predicated region
    $region10: #{tpu_custom_call.1} parent=1 // pred_check
      _
    $region11: #{tpu_custom_call.1} parent=1 // pred_check_branch
      %38 = sbr.rel (0) target = $region13
    $region12: #{tpu_custom_call.1} parent=1 // pred_region
      %s40 = ssub.s32 256, 256
      %41 = vsyncadd [#allocation6], %s40
      %s42 = sshll.u32 [#allocation7], 4
      %s43 = int_to_ptr.vmem [resolvable:$true] %s42
      %48 = dma.hbm_to_vmem [thread:$0]  %s2, 256, %s43, [#allocation6], 64, 64, 4
    $region13: #{tpu_custom_call.1} parent=1 // pred_fallthru
      _
    // Predicated region
    $region14: #{tpu_custom_call.1} parent=1 // pred_check
      _
    $region15: #{tpu_custom_call.1} parent=1 // pred_check_branch
      %50 = sbr.rel (0) target = $region17
    $region16: #{tpu_custom_call.1} parent=1 // pred_region
      %s52 = ssub.s32 256, 256
      %53 = vsyncadd [#allocation9], %s52
      %s54 = sshll.u32 [#allocation8], 4
      %s55 = int_to_ptr.vmem [resolvable:$true] %s54
      %60 = dma.hbm_to_vmem [thread:$0]  %s3, 256, %s55, [#allocation9], 128, 128, 8
    $region17: #{tpu_custom_call.1} parent=1 // pred_fallthru
      _
    // Predicated region
    $region18: #{tpu_custom_call.1} parent=1 // pred_check
      _
    $region19: #{tpu_custom_call.1} parent=1 // pred_check_branch
      %62 = sbr.rel (0) target = $region21
    $region20: #{tpu_custom_call.1} parent=1 // pred_region
      %63 = dma.done [#allocation3], 256
    $region21: #{tpu_custom_call.1} parent=1 // pred_fallthru
      _
    // Predicated region
    $region22: #{tpu_custom_call.1} parent=1 // pred_check
      _
    $region23: #{tpu_custom_call.1} parent=1 // pred_check_branch
      %65 = sbr.rel (0) target = $region25
    $region24: #{tpu_custom_call.1} parent=1 // pred_region
      %66 = dma.done [#allocation6], 128
    $region25: #{tpu_custom_call.1} parent=1 // pred_fallthru
      _
    // Predicated region
    $region26: #{tpu_custom_call.1} parent=1 // pred_check
      _
    $region27: #{tpu_custom_call.1} parent=1 // pred_check_branch
      %68 = sbr.rel (0) target = $region29
    $region28: #{tpu_custom_call.1} parent=1 // pred_region
      %69 = dma.done [#allocation6], 256
    $region29: #{tpu_custom_call.1} parent=1 // pred_fallthru
      _
    // Predicated region
    $region30: #{tpu_custom_call.1} parent=1 // pred_check
      _
    $region31: #{tpu_custom_call.1} parent=1 // pred_check_branch
      %71 = sbr.rel (0) target = $region33
    $region32: #{tpu_custom_call.1} parent=1 // pred_region
      %72 = dma.done [#allocation9], 256
    $region33: #{tpu_custom_call.1} parent=1 // pred_fallthru
      _
    %v74 = vld [vmem:[#allocation5] sm:$0xf]
    %v75 = vld [vmem:[#allocation5 + $0x4] sm:$0xf]
    %v76 = vld [vmem:[#allocation7] sm:$0xf]
    %v77 = vld [vmem:[#allocation7 + $0x4] sm:$0xf]
    %v78 = vld [vmem:[#allocation7 + $0x8] sm:$0xf]
    %v79 = vld [vmem:[#allocation7 + $0xc] sm:$0xf]
    %v82 = vunpack.c.l.b16 %v74
    %v83 = vunpack.c.l.b16 %v75
    %v84 = vpack.c.b16 %v83, %v82
    %v89 = vunpack.c.l.b16 %v76
    %v90 = vunpack.c.l.b16 %v77
    %v91 = vunpack.c.l.b16 %v78
    %v92 = vunpack.c.l.b16 %v79
    %v93 = vpack.c.b16 %v90, %v89
    %v94 = vpack.c.b16 %v92, %v91
    %vm97 = vcmask 261120
    %v99 = vsel %vm97, %v84, 0
    %101 = vmatprep.subr.bf16.mxu0 0
    %102 = vmatpush1.bf16.msra.mxu0 %v93
    %103 = vmatprep.subr.bf16.mxu0 0
    %104 = vmatpush1.bf16.msra.mxu0 %v94
    %105 = vmatprep.subr.bf16.mxu0 0
    %106 = vmatpush1.bf16.msra.mxu0 0
    %107 = vmatprep.subr.bf16.mxu0 0
    %108 = vmatpush1.bf16.msra.mxu0 0
    %109 = vmatprep.subr.bf16.mxu0 0
    %110 = vmatpush1.bf16.msra.mxu0 0
    %111 = vmatprep.subr.bf16.mxu0 0
    %112 = vmatpush1.bf16.msra.mxu0 0
    %113 = vmatprep.subr.bf16.mxu0 0
    %114 = vmatpush1.bf16.msra.mxu0 0
    %115 = vmatprep.subr.bf16.mxu0 0
    %116 = vmatpush1.bf16.msra.mxu0 0
    %117 = vmatprep.subr.bf16.mxu0 0
    %118 = vmatpush1.bf16.msra.mxu0 0
    %119 = vmatprep.subr.bf16.mxu0 0
    %120 = vmatpush1.bf16.msra.mxu0 0
    %121 = vmatprep.subr.bf16.mxu0 0
    %122 = vmatpush1.bf16.msra.mxu0 0
    %123 = vmatprep.subr.bf16.mxu0 0
    %124 = vmatpush1.bf16.msra.mxu0 0
    %125 = vmatprep.subr.bf16.mxu0 0
    %126 = vmatpush1.bf16.msra.mxu0 0
    %127 = vmatprep.subr.bf16.mxu0 0
    %128 = vmatpush1.bf16.msra.mxu0 0
    %129 = vmatprep.subr.bf16.mxu0 0
    %130 = vmatpush1.bf16.msra.mxu0 0
    %131 = vmatprep.subr.bf16.mxu0 0
    %132 = vmatpush1.bf16.msra.mxu0 0
    %133 = vmatprep.mubr.bf16.mxu0 0
    %134 = vmatmul.mubr.bf16.gmra.mrb[0].mxu0 %v99
    %v135 = vpop.f32.mrb[0].mxu0
    %v136 = vadd.f32 0.0, %v135
    %v137 = vpop.f32.mrb[0].mxu0
    %v138 = vpop.f32.mrb[0].mxu0
    %v139 = vadd.f32 0.0, %v138
    %v140 = vpop.f32.mrb[0].mxu0
    %141 = vdwg.mxu0
    %v142 = vld [vmem:[#allocation2] sm:$0xff]
    %v143 = vld [vmem:[#allocation2 + $0x8] sm:$0xff]
    %v144 = vld [vmem:[#allocation8] sm:$0xff]
    %v145 = vld [vmem:[#allocation8 + $0x8] sm:$0xff]
    %147 = vset.pattern.permute.xlu0 0
    %148 = vperm.xlu0 %147, %v144
    %v149 = vpop.permute.xlu0 %148
    %152 = vset.pattern.permute.xlu0 0
    %153 = vperm.xlu0 %152, %v145
    %v154 = vpop.permute.xlu0 %153
    %v156 = vmul.f32 %v149, %v136
    %v157 = vmul.f32 %v154, %v139
    %v158 = vadd.f32 %v142, %v156
    %v159 = vadd.f32 %v143, %v157
    %160 = vst.msk [vmem:[#allocation10] sm:$0xff] %vm97, %v158
    %161 = vst.msk [vmem:[#allocation10 + $0x8] sm:$0xff] %vm97, %v159
    // Predicated region
    $region34: #{tpu_custom_call.1} parent=1 // pred_check
      _
    $region35: #{tpu_custom_call.1} parent=1 // pred_check_branch
      %163 = sbr.rel (0) target = $region37
    $region36: #{tpu_custom_call.1} parent=1 // pred_region
      %s165 = ssub.s32 256, 256
      %166 = vsyncadd [#allocation4], %s165
      %s167 = sshll.u32 [#allocation10], 4
      %s168 = int_to_ptr.vmem [resolvable:$true] %s167
      %173 = dma.vmem_to_hbm [thread:$0]  %s168, 256, %s4, [#allocation4], 128, 128, 8
    $region37: #{tpu_custom_call.1} parent=1 // pred_fallthru
      _
    // Predicated region
    $region38: #{tpu_custom_call.1} parent=1 // pred_check
      _
    $region39: #{tpu_custom_call.1} parent=1 // pred_check_branch
      %175 = sbr.rel (0) target = $region41
    $region40: #{tpu_custom_call.1} parent=1 // pred_region
      %176 = dma.done [#allocation4], 256
    $region41: #{tpu_custom_call.1} parent=1 // pred_fallthru
      _
    %177 = vsyncpa [#allocation3], 1
    %178 = vsyncpa [#allocation6], 1
    %179 = vsyncpa [#allocation9], 1
    %180 = vsyncpa [#allocation4], 1

</llo_original>
